<compile_context>
chip_gen: v6e
topology: v6e:2x2x1
jax: 0.10.0
libtpu: 0.0.40
codegen_flags: <defaults>
</compile_context>

<pallas_src>
import jax
import jax.numpy as jnp
from jax.experimental import pallas as pl
from jax.experimental.pallas import tpu as pltpu


# ----------------------------- Pallas kernel ------------------------------ #

def _fpn_conv3x3_kernel(x_ref, w_ref, b_ref, o_ref):
    """3x3 'same' conv of one (batch, row-band) tile.

    x_ref : (1, 1, TH+2, Wp+2, Cin)   compute dtype, zero-padded input + halo
    w_ref : (3, 3*Cin, Cout_p)        compute dtype, ordered (ky, kx*Cin, cout)
    b_ref : (1, Cout_p)               f32 bias
    o_ref : (1, 1, TH*Wp, Cout_p)     output band (rows flattened on sublanes)
    """
    TH = x_ref.shape[2] - 2
    Wp = x_ref.shape[3] - 2
    Cin = x_ref.shape[4]
    Cout_p = o_ref.shape[3]
    S = TH * Wp

    xs = x_ref[0, 0]                                      # (TH+2, Wp+2, Cin)
    # One sublane(W)-shifted view per kx, fused on the lane axis -> the three
    # kx taps become a single contraction of width 3*Cin.  The ky shifts below
    # are slices of the leading (untiled) axis and therefore free.
    cols = jnp.concatenate([xs[:, kx:kx + Wp, :] for kx in range(3)], axis=-1)

    # Local f32 accumulation (no VMEM scratch, no read-modify-write); bias is
    # folded in as the chain's first term.
    acc = jnp.broadcast_to(b_ref[...], (S, Cout_p)).astype(jnp.float32)

    if 3 * Cin < 128:
        # Thin channels: fold all 9 taps (full im2col, K = 9*Cin) into a
        # single MXU contraction so the under-filled lane axis is hit once.
        patch = jnp.concatenate([cols[ky:ky + TH] for ky in range(3)], axis=-1)
        acc = acc + jnp.dot(patch.reshape(S, 3 * 3 * Cin),
                            w_ref[...].reshape(3 * 3 * Cin, Cout_p),
                            preferred_element_type=jnp.float32)
    else:
        # K = 3*Cin per ky tap: 3 chained MXU contractions (MRB-friendly on
        # v7x, no accumulator VMEM traffic on v5e/v6e).
        for ky in range(3):
            patch = cols[ky:ky + TH].reshape(S, 3 * Cin)
            acc = acc + jnp.dot(patch, w_ref[ky],
                                preferred_element_type=jnp.float32)

    o_ref[0, 0] = acc.astype(o_ref.dtype)


# ------------------------------ host helpers ------------------------------ #

def _round_up(x, m):
    return ((x + m - 1) // m) * m


def _vmem_capacity_bytes():
    try:
        return int(pltpu.get_tpu_info().vmem_capacity_bytes)
    except Exception:
        return 64 << 20          # conservative fallback (v7x per-core VMEM)


def _band_vmem_bytes(TH, Wp, Cin, Cout_p, in_bytes, out_bytes):
    """Tiling-aware VMEM footprint estimate (bytes) of one grid step."""
    sub_in = 8 * (4 // in_bytes)             # sublane granule of compute dtype
    lane_cin = _round_up(Cin, 128)           # channel axis lane padding
    lane_co = _round_up(Cout_p, 128)
    K = 3 * Cin
    inp = 2 * (TH + 2) * _round_up(Wp + 2, sub_in) * lane_cin * in_bytes
    wgt = 2 * 3 * _round_up(K, sub_in) * lane_co * in_bytes
    bia = 2 * 8 * lane_co * 4
    out = 2 * TH * Wp * lane_co * out_bytes
    # In-kernel temporaries: fused-kx slab + ~2 live band-sized f32 values.
    tmp = (TH + 2) * Wp * _round_up(K, 128) * in_bytes + 2 * TH * Wp * lane_co * 4
    if K < 128:                               # full-im2col path materializes (S, 9*Cin)
        tmp += TH * Wp * _round_up(3 * K, 128) * in_bytes
    return inp + wgt + bia + out + tmp


def _pick_band_rows(N, H, Wp, Cin, Cout_p, in_bytes, out_bytes, budget,
                    min_grid_points):
    """Largest row band (multiple of 8) that fits the VMEM budget while
    keeping at least `min_grid_points` grid steps when possible."""
    h8 = _round_up(H, 8)
    cands = [c for c in (512, 384, 256, 192, 128, 96, 64, 48, 32, 24, 16, 8)
             if c <= h8]
    if not cands or cands[0] != h8:
        cands = [h8] + cands                  # whole image as a single band
    th = 8                                    # floor (may still exceed budget
    for cand in cands:                        # for absurd W/C; limit is raised)
        if _band_vmem_bytes(cand, Wp, Cin, Cout_p, in_bytes, out_bytes) > budget:
            continue
        if cand > 8 and N * (-(-H // cand)) < min_grid_points:
            continue
        th = cand
        break
    return th


def _nearest_upsample_add_nchw(x, y):
    """x + F.interpolate(y, size=x.shape[2:], mode='nearest')   (NCHW)."""
    in_h, in_w = y.shape[2], y.shape[3]
    out_h, out_w = x.shape[2], x.shape[3]
    h_idx = (jnp.arange(out_h) * in_h) // out_h
    w_idx = (jnp.arange(out_w) * in_w) // out_w
    return x + y[:, :, h_idx][:, :, :, w_idx]


def fpn_prediction_block(x_nchw, w_oihw, bias, y_nchw=None, mode="nearest", *,
                         compute_dtype=jnp.bfloat16, band_rows=None,
                         data_format="NCHW"):
    """Forward pass of FPNPredictionBlock.  NCHW in; NCHW (default) out."""
    if y_nchw is not None:
        if mode != "nearest":
            # TODO(synk): 'bilinear' (align_corners=True) interpolation is not
            # implemented; the module default is 'nearest'.
            raise NotImplementedError("only mode='nearest' is supported")
        x_nchw = _nearest_upsample_add_nchw(x_nchw, y_nchw)

    N, Cin, H, W = x_nchw.shape
    Cout = w_oihw.shape[0]
    out_dtype = x_nchw.dtype
    in_bytes = jnp.dtype(compute_dtype).itemsize
    out_bytes = jnp.dtype(out_dtype).itemsize

    sub_g = 8 * (4 // in_bytes)              # sublane granule: 8 f32 / 16 bf16
    Wp = _round_up(W, sub_g)                 # keep kx slices / reshapes aligned
    # Small prediction heads: pad Cout only to the sublane granule so the
    # output HBM array / DMA is ~Cout wide (not 128); >=128 stays lane-dense.
    Cout_p = _round_up(Cout, 128) if Cout >= 128 else _round_up(Cout, 8)

    vmem_cap = _vmem_capacity_bytes()
    megacore = vmem_cap <= (64 << 20)        # v7x: 64 MiB per TC, 2 TCs/chip
    budget = int(0.45 * vmem_cap)            # 128 MiB on v5e/v6e -> big bands
    min_grid = 4 if megacore else 2          # >=2 steps/core keeps DMA overlapped

    if band_rows is None:
        TH = _pick_band_rows(N, H, Wp, Cin, Cout_p, in_bytes, out_bytes,
                             budget, min_grid)
    else:
        TH = max(8, _round_up(band_rows, 8))
    NB = -(-H // TH)
    Hp = NB * TH
    S = TH * Wp

    # --- Fused preprocessing (one XLA fusion under jit): NCHW->NHWC, compute-
    # dtype cast, zero pad (conv halo + row/col alignment) and, only when
    # NB > 1, the overlapping row-band gather that gives each step its halo.
    x_nhwc = jnp.transpose(x_nchw, (0, 2, 3, 1)).astype(compute_dtype)
    xpad = jnp.pad(x_nhwc, ((0, 0), (1, 1 + Hp - H), (1, 1 + Wp - W), (0, 0)))
    if NB == 1:
        x_bands = xpad[:, None]                            # (N, 1, TH+2, Wp+2, Cin)
    else:
        rows = jnp.arange(NB)[:, None] * TH + jnp.arange(TH + 2)[None, :]
        x_bands = xpad[:, rows]                            # (N, NB, TH+2, Wp+2, Cin)

    # Weight: OIHW -> (ky, kx*Cin, Cout_p), matching the kernel's fused-kx
    # patch ordering.  (Tiny; hoist outside jit if calling in a tight loop.)
    w_t = jnp.transpose(w_oihw, (2, 3, 1, 0)).astype(compute_dtype)
    w_p = jnp.pad(w_t.reshape(3, 3 * Cin, Cout),
                  ((0, 0), (0, 0), (0, Cout_p - Cout)))
    b_p = jnp.pad(bias.astype(jnp.float32), (0, Cout_p - Cout)).reshape(1, Cout_p)

    need = _band_vmem_bytes(TH, Wp, Cin, Cout_p, in_bytes, out_bytes)
    vmem_limit = int(min(0.9 * vmem_cap, max(1.3 * need + (8 << 20), 32 << 20)))

    out = pl.pallas_call(
        _fpn_conv3x3_kernel,
        out_shape=jax.ShapeDtypeStruct((N, NB, S, Cout_p), out_dtype),
        grid_spec=pltpu.PrefetchScalarGridSpec(
            num_scalar_prefetch=0,
            grid=(N, NB),
            in_specs=[
                pl.BlockSpec((1, 1, TH + 2, Wp + 2, Cin),
                             lambda n, b: (n, b, 0, 0, 0)),
                # Weight / bias are grid-invariant (constant index_map).
                pl.BlockSpec((3, 3 * Cin, Cout_p), lambda n, b: (0, 0, 0)),
                pl.BlockSpec((1, Cout_p), lambda n, b: (0, 0)),
            ],
            out_specs=pl.BlockSpec((1, 1, S, Cout_p), lambda n, b: (n, b, 0, 0)),
        ),
        compiler_params=pltpu.CompilerParams(
            # Fully independent grid -> shard across the v7x megacore.
            dimension_semantics=("parallel", "parallel"),
            vmem_limit_bytes=vmem_limit),
    )(x_bands, w_p, b_p)

    # (N, NB, TH*Wp, Cout_p) -> (N, Hp, Wp, Cout_p) -> crop row/col/channel pads.
    out = out.reshape(N, Hp, Wp, Cout_p)[:, :H, :W, :Cout]
    if data_format == "NHWC":
        return out
    return jnp.transpose(out, (0, 3, 1, 2))


# --------------------------------- demo ----------------------------------- #

if __name__ == "__main__":
    key = jax.random.PRNGKey(0)
    k1, k2, k3, k4, k5, k6, k7, k8 = jax.random.split(key, 8)

    def ref_conv(xin, w, b):
        co = w.shape[0]
        return jax.lax.conv_general_dilated(
            xin, w, (1, 1), ((1, 1), (1, 1)),
            dimension_numbers=("NCHW", "OIHW", "NCHW")) + b.reshape(1, co, 1, 1)

    # 1) x + nearest-upsampled y, thin channels (full-im2col path), explicit
    #    small bands (exercises the halo / multi-band gather path).
    N, Cin, Cout, H, W = 2, 4, 8, 16, 16
    x = jax.random.normal(k1, (N, Cin, H, W), jnp.float32)
    y = jax.random.normal(k2, (N, Cin, H // 2, W // 2), jnp.float32)
    w = jax.random.normal(k3, (Cout, Cin, 3, 3), jnp.float32) * 0.1
    b = jax.random.normal(k4, (Cout,), jnp.float32) * 0.1
    fwd = jax.jit(lambda xa, ya: fpn_prediction_block(xa, w, b, ya, band_rows=8))
    out = jax.block_until_ready(fwd(x, y))
    ref = ref_conv(_nearest_upsample_add_nchw(x, y), w, b)
    assert out.shape == (N, Cout, H, W)
    assert jnp.allclose(out, ref, atol=5e-2, rtol=5e-2), \
        float(jnp.max(jnp.abs(out - ref)))

    # 2) y=None, H not a multiple of the band size (auto band pick + row crop).
    H2 = 12
    x2 = jax.random.normal(k5, (1, Cin, H2, W), jnp.float32)
    fwd2 = jax.jit(lambda xa: fpn_prediction_block(xa, w, b))
    out2 = jax.block_until_ready(fwd2(x2))
    ref2 = ref_conv(x2, w, b)
    assert out2.shape == (1, Cout, H2, W)
    assert jnp.allclose(out2, ref2, atol=5e-2, rtol=5e-2), \
        float(jnp.max(jnp.abs(out2 - ref2)))

    # 3) Wider channels (K=3*Cin per-ky path), W not sublane aligned (column
    #    pad + crop), float32 compute path.
    N3, Cin3, Cout3, H3, W3 = 1, 64, 16, 8, 20
    x3 = jax.random.normal(k6, (N3, Cin3, H3, W3), jnp.float32)
    w3 = jax.random.normal(k7, (Cout3, Cin3, 3, 3), jnp.float32) * 0.05
    b3 = jax.random.normal(k8, (Cout3,), jnp.float32) * 0.1
    fwd3 = jax.jit(lambda xa: fpn_prediction_block(
        xa, w3, b3, compute_dtype=jnp.float32))
    out3 = jax.block_until_ready(fwd3(x3))
    ref3 = ref_conv(x3, w3, b3)
    assert out3.shape == (N3, Cout3, H3, W3)
    assert jnp.allclose(out3, ref3, atol=5e-2, rtol=5e-2), \
        float(jnp.max(jnp.abs(out3 - ref3)))

    print("KERNEL_OK")
</pallas_src>

<mosaic_0001>
module attributes {stable_mosaic.version = 11 : i64} {
  func.func @_fpn_conv3x3_kernel(%arg0: i32, %arg1: i32, %arg2: memref<1x1x10x18x4xbf16, #tpu.memory_space<vmem>>, %arg3: memref<3x12x8xbf16, #tpu.memory_space<vmem>>, %arg4: memref<1x8xf32, #tpu.memory_space<vmem>>, %arg5: memref<1x1x128x8xf32, #tpu.memory_space<vmem>>) attributes {dimension_semantics = [#tpu.dimension_semantics<parallel>, #tpu.dimension_semantics<parallel>], iteration_bounds = array<i64: 2, 2>, scalar_prefetch = 0 : i64, scratch_operands = 0 : i64, tpu.core_type = #tpu.core_type<tc>, window_params = [{transform_indices = @transform_0, window_bounds = array<i64: 1, 1, 10, 18, 4>}, {pipeline_mode = #tpu.pipeline_mode<synchronous>, transform_indices = @transform_1, window_bounds = array<i64: 3, 12, 8>}, {pipeline_mode = #tpu.pipeline_mode<synchronous>, transform_indices = @transform_2, window_bounds = array<i64: 1, 8>}, {transform_indices = @transform_3, window_bounds = array<i64: 1, 1, 128, 8>}]} {
    %c0 = arith.constant 0 : index
    %c0_0 = arith.constant 0 : index
    %c0_1 = arith.constant 0 : index
    %c0_2 = arith.constant 0 : index
    %c0_3 = arith.constant 0 : index
    %0 = vector.load %arg2[%c0, %c0_0, %c0_1, %c0_2, %c0_3] : memref<1x1x10x18x4xbf16, #tpu.memory_space<vmem>>, vector<1x1x10x18x4xbf16>
    %1 = vector.shape_cast %0 : vector<1x1x10x18x4xbf16> to vector<10x18x4xbf16>
    %2 = vector.extract_strided_slice %1 {offsets = [0, 0, 0], sizes = [10, 16, 4], strides = [1, 1, 1]} : vector<10x18x4xbf16> to vector<10x16x4xbf16>
    %3 = vector.extract_strided_slice %1 {offsets = [0, 1, 0], sizes = [10, 16, 4], strides = [1, 1, 1]} : vector<10x18x4xbf16> to vector<10x16x4xbf16>
    %4 = vector.extract_strided_slice %1 {offsets = [0, 2, 0], sizes = [10, 16, 4], strides = [1, 1, 1]} : vector<10x18x4xbf16> to vector<10x16x4xbf16>
    %5 = tpu.concatenate %2, %3, %4 in 2 : vector<10x16x4xbf16>, vector<10x16x4xbf16>, vector<10x16x4xbf16> -> vector<10x16x12xbf16>
    %c0_4 = arith.constant 0 : index
    %c0_5 = arith.constant 0 : index
    %6 = vector.load %arg4[%c0_4, %c0_5] : memref<1x8xf32, #tpu.memory_space<vmem>>, vector<1x8xf32>
    %7 = vector.shape_cast %6 : vector<1x8xf32> to vector<1x8xf32>
    %8 = vector.broadcast %7 : vector<1x8xf32> to vector<128x8xf32>
    %9 = vector.extract_strided_slice %5 {offsets = [0, 0, 0], sizes = [8, 16, 12], strides = [1, 1, 1]} : vector<10x16x12xbf16> to vector<8x16x12xbf16>
    %10 = vector.extract_strided_slice %5 {offsets = [1, 0, 0], sizes = [8, 16, 12], strides = [1, 1, 1]} : vector<10x16x12xbf16> to vector<8x16x12xbf16>
    %11 = vector.extract_strided_slice %5 {offsets = [2, 0, 0], sizes = [8, 16, 12], strides = [1, 1, 1]} : vector<10x16x12xbf16> to vector<8x16x12xbf16>
    %12 = tpu.concatenate %9, %10, %11 in 2 : vector<8x16x12xbf16>, vector<8x16x12xbf16>, vector<8x16x12xbf16> -> vector<8x16x36xbf16>
    %13 = vector.shape_cast %12 : vector<8x16x36xbf16> to vector<128x36xbf16>
    %c0_6 = arith.constant 0 : index
    %c0_7 = arith.constant 0 : index
    %c0_8 = arith.constant 0 : index
    %14 = vector.load %arg3[%c0_6, %c0_7, %c0_8] : memref<3x12x8xbf16, #tpu.memory_space<vmem>>, vector<3x12x8xbf16>
    %15 = vector.shape_cast %14 : vector<3x12x8xbf16> to vector<36x8xbf16>
    %cst = arith.constant dense<0.000000e+00> : vector<128x8xf32>
    %16 = tpu.matmul %13, %15, %cst {dimension_numbers = #tpu.dot_dimension_numbers<[1], [0], [0], [1], [0, 0, 1, 1], [], []>} : vector<128x36xbf16>, vector<36x8xbf16>, vector<128x8xf32> -> vector<128x8xf32>
    %17 = arith.addf %8, %16 : vector<128x8xf32>
    %c0_9 = arith.constant 0 : index
    %c0_10 = arith.constant 0 : index
    %c0_11 = arith.constant 0 : index
    %c0_12 = arith.constant 0 : index
    %18 = vector.load %arg5[%c0_9, %c0_10, %c0_11, %c0_12] : memref<1x1x128x8xf32, #tpu.memory_space<vmem>>, vector<1x1x128x8xf32>
    %19 = vector.shape_cast %18 : vector<1x1x128x8xf32> to vector<128x8xf32>
    %20 = vector.shape_cast %17 : vector<128x8xf32> to vector<1x1x128x8xf32>
    tpu.vector_store %arg5[%c0_9, %c0_10, %c0_11, %c0_12], %20 {strides = array<i32>} : memref<1x1x128x8xf32, #tpu.memory_space<vmem>>, vector<1x1x128x8xf32>,
    return
  }
  func.func @transform_0(%arg0: i32, %arg1: i32) -> (i32, i32, i32, i32, i32) {
    %c0_i32 = arith.constant 0 : i32
    %c0_i32_0 = arith.constant 0 : i32
    %c0_i32_1 = arith.constant 0 : i32
    %c0_i32_2 = arith.constant 0 : i32
    return %arg0, %arg1, %c0_i32, %c0_i32_0, %c0_i32_1 : i32, i32, i32, i32, i32
  }
  func.func @transform_1(%arg0: i32, %arg1: i32) -> (i32, i32, i32) {
    %c0_i32 = arith.constant 0 : i32
    %c0_i32_0 = arith.constant 0 : i32
    %c0_i32_1 = arith.constant 0 : i32
    %c0_i32_2 = arith.constant 0 : i32
    return %c0_i32, %c0_i32_0, %c0_i32_1 : i32, i32, i32
  }
  func.func @transform_2(%arg0: i32, %arg1: i32) -> (i32, i32) {
    %c0_i32 = arith.constant 0 : i32
    %c0_i32_0 = arith.constant 0 : i32
    %c0_i32_1 = arith.constant 0 : i32
    return %c0_i32, %c0_i32_0 : i32, i32
  }
  func.func @transform_3(%arg0: i32, %arg1: i32) -> (i32, i32, i32, i32) {
    %c0_i32 = arith.constant 0 : i32
    %c0_i32_0 = arith.constant 0 : i32
    %c0_i32_1 = arith.constant 0 : i32
    return %arg0, %arg1, %c0_i32, %c0_i32_0 : i32, i32, i32, i32
  }
}

</mosaic_0001>

<llo_original>
// kernel: _lambda_.1
$region0: #{_lambda_.1}
  #allocation0 [shape = 'u32[]', space=smem, size = 0x4, offset = 0x4, fixed_abs, tag = 'smem constant byte address 0x4 - core index']
  #allocation1 [shape = 'u32[144,128]{1,0:T(1,128)}', space=vmem, size = 0x12000, scoped, tag = 'internal scratch']
  %s0 = inlined_call_operand.vmem [shape: bf16[2,2,10,18,4], index: 0, kind: input, shape index: {}]
  %s1 = inlined_call_operand.vmem [shape: bf16[3,12,8], index: 1, kind: input, shape index: {}]
  %s2 = inlined_call_operand.vmem [shape: f32[1,8], index: 2, kind: input, shape index: {}]
  %s3 = inlined_call_operand.vmem [shape: f32[2,2,128,8], index: 3, kind: output, shape index: {}]
  %s4 = sld [smem:[#allocation0]]
  $region45: #{_lambda_.1} parent=0
    _
  %s6 = ssub.s32 1, %s4
  %s7 = scalar_select 0, %s6, %s4
  loop: start=0, step=1, limit=6
  $region2: #{_lambda_.1} parent=0 // loop_pre_header
    _
  $region3: #{_lambda_.1} parent=0 // loop_header
    %s9 = sphi 0, %s13
    %p10 = scmp.ge.s32.totalorder %s9, 6
    %s16 = sphi 0, %s28
    %s17 = sphi 0, %s24
    %s18 = sphi 0, %s16
    %s19 = sphi 0, %s17
    %s20 = sphi 0, %s18
    %s21 = sphi 0, %s19
    %s33 = sphi 0, %s35
    %s36 = sphi 0, %s33
    %s37 = sphi 0, %s36
    %s53 = sphi 0, %s37
    %s57 = sphi 0, %s57
    %s59 = sphi 0, %s57
    %s60 = sphi 0, %s59
    %s74 = sphi 0, %s60
    %s78 = sphi 0, %s78
    %s80 = sphi 0, %s78
    %s81 = sphi 0, %s80
    %s95 = sphi 0, %s81
    %s103 = sphi 0, %s105
    %s106 = sphi 0, %s103
    %s107 = sphi 0, %s106
    %s123 = sphi 0, %s107
  $region4: #{_lambda_.1} parent=0 // loop_header_branch
    %12 = sbr.rel (%p10) target = $region8
  $region5: #{_lambda_.1} parent=0 // loop_body
    %s14 = ssub.s32 %s9, 1
    %s15 = ssub.s32 %s9, 2
    %s22 = sadd.s32 1, %s17
    %p23 = scmp.ge.s32.totalorder %s22, 2
    %s24 = scalar_select %p23, 0, %s22
    %s25 = sadd.s32 1, %s16
    %s26 = scalar_select %p23, %s25, %s16
    %p27 = scmp.ge.s32.totalorder %s26, 2
    %s28 = scalar_select %p27, 0, %s26
    %s29 = ssub.s32 %s16, %s28
    %s30 = ssub.s32 %s17, %s24
    %s31 = sor.u32 %s29, %s30
    %p32 = scmp.eq.s32.totalorder %s31, 0
    %s34 = sadd.s32 %s33, 1
    %s35 = scalar_select %p32, %s33, %s34
    %p38 = pneg %p32
    %p39 = scmp.eq.s32.totalorder %s9, 3
    %p40 = por %p38, %p39
    %p41 = scmp.ne.s32.totalorder %s33, %s36
    %p42 = scmp.eq.s32.totalorder %s9, 0
    %p43 = por %p41, %p42
    %p44 = scmp.ne.s32.totalorder %s33, %s36
    %p45 = scmp.eq.s32.totalorder %s14, 3
    %p46 = por %p44, %p45
    %p47 = scmp.ne.s32.totalorder %s36, %s37
    %p48 = scmp.eq.s32.totalorder %s14, 0
    %p49 = por %p47, %p48
    %p50 = scmp.ne.s32.totalorder %s36, %s37
    %p51 = scmp.eq.s32.totalorder %s15, 3
    %p52 = por %p50, %p51
    %p54 = scmp.ne.s32.totalorder %s37, %s53
    %p55 = scmp.eq.s32.totalorder %s15, 0
    %p56 = por %p54, %p55
    %s58 = sadd.s32 %s57, 1
    %p61 = scmp.eq.s32.totalorder %s9, 3
    %p62 = scmp.ne.s32.totalorder %s57, %s59
    %p63 = scmp.eq.s32.totalorder %s9, 0
    %p64 = por %p62, %p63
    %p65 = scmp.ne.s32.totalorder %s57, %s59
    %p66 = scmp.eq.s32.totalorder %s14, 3
    %p67 = por %p65, %p66
    %p68 = scmp.ne.s32.totalorder %s59, %s60
    %p69 = scmp.eq.s32.totalorder %s14, 0
    %p70 = por %p68, %p69
    %p71 = scmp.ne.s32.totalorder %s59, %s60
    %p72 = scmp.eq.s32.totalorder %s15, 3
    %p73 = por %p71, %p72
    %p75 = scmp.ne.s32.totalorder %s60, %s74
    %p76 = scmp.eq.s32.totalorder %s15, 0
    %p77 = por %p75, %p76
    %s79 = sadd.s32 %s78, 1
    %p82 = scmp.eq.s32.totalorder %s9, 3
    %p83 = scmp.ne.s32.totalorder %s78, %s80
    %p84 = scmp.eq.s32.totalorder %s9, 0
    %p85 = por %p83, %p84
    %p86 = scmp.ne.s32.totalorder %s78, %s80
    %p87 = scmp.eq.s32.totalorder %s14, 3
    %p88 = por %p86, %p87
    %p89 = scmp.ne.s32.totalorder %s80, %s81
    %p90 = scmp.eq.s32.totalorder %s14, 0
    %p91 = por %p89, %p90
    %p92 = scmp.ne.s32.totalorder %s80, %s81
    %p93 = scmp.eq.s32.totalorder %s15, 3
    %p94 = por %p92, %p93
    %p96 = scmp.ne.s32.totalorder %s81, %s95
    %p97 = scmp.eq.s32.totalorder %s15, 0
    %p98 = por %p96, %p97
    %s99 = ssub.s32 %s16, %s28
    %s100 = ssub.s32 %s17, %s24
    %s101 = sor.u32 %s99, %s100
    %p102 = scmp.eq.s32.totalorder %s101, 0
    %s104 = sadd.s32 %s103, 1
    %s105 = scalar_select %p102, %s103, %s104
    %p108 = pneg %p102
    %p109 = scmp.eq.s32.totalorder %s9, 3
    %p110 = por %p108, %p109
    %p111 = scmp.ne.s32.totalorder %s103, %s106
    %p112 = scmp.eq.s32.totalorder %s9, 0
    %p113 = por %p111, %p112
    %p114 = scmp.ne.s32.totalorder %s103, %s106
    %p115 = scmp.eq.s32.totalorder %s14, 3
    %p116 = por %p114, %p115
    %p117 = scmp.ne.s32.totalorder %s106, %s107
    %p118 = scmp.eq.s32.totalorder %s14, 0
    %p119 = por %p117, %p118
    %p120 = scmp.ne.s32.totalorder %s106, %s107
    %p121 = scmp.eq.s32.totalorder %s15, 3
    %p122 = por %p120, %p121
    %p124 = scmp.ne.s32.totalorder %s107, %s123
    %p125 = scmp.eq.s32.totalorder %s15, 0
    %p126 = por %p124, %p125
    %p127 = scmp.le.s32.totalorder 1, %s9
    %p128 = scmp.lt.s32.totalorder %s9, 5
    %p129 = pnand %p127, %p128
    %p130 = pneg %p129
    // Predicated region
    $region9: #{_lambda_.1} parent=5 // pred_check
      _
    $region10: #{_lambda_.1} parent=5 // pred_check_branch
      %132 = sbr.rel (%p129) target = $region12
    $region11: #{_lambda_.1} parent=5 // pred_region
      %s133 = ssub.s32 %s9, 1
      // Predicated region
      $region13: #{_lambda_.1} parent=11 // pred_check
        %p134 = pneg %p70
      $region14: #{_lambda_.1} parent=11 // pred_check_branch
        %136 = sbr.rel (%p134) target = $region16
      $region15: #{_lambda_.1} parent=11 // pred_region
        _
      $region16: #{_lambda_.1} parent=11 // pred_fallthru
        _
      // Predicated region
      $region17: #{_lambda_.1} parent=11 // pred_check
        %p137 = pneg %p91
      $region18: #{_lambda_.1} parent=11 // pred_check_branch
        %139 = sbr.rel (%p137) target = $region20
      $region19: #{_lambda_.1} parent=11 // pred_region
        _
      $region20: #{_lambda_.1} parent=11 // pred_fallthru
        _
    $region12: #{_lambda_.1} parent=5 // pred_fallthru
      _
    %p140 = scmp.lt.s32.totalorder %s9, 4
    // Predicated region
    $region21: #{_lambda_.1} parent=5 // pred_check
      %p141 = pneg %p140
    $region22: #{_lambda_.1} parent=5 // pred_check_branch
      %143 = sbr.rel (%p141) target = $region24
    $region23: #{_lambda_.1} parent=5 // pred_region
      // Predicated region
      $region25: #{_lambda_.1} parent=23 // pred_check
        %p144 = pneg %p43
      $region26: #{_lambda_.1} parent=23 // pred_check_branch
        %146 = sbr.rel (%p144) target = $region28
      $region27: #{_lambda_.1} parent=23 // pred_region
        %p147 = scmp.lt.s32.totalorder %s16, 1
        %s148 = scalar_select %p147, %s16, 1
        %p149 = scmp.lt.s32.totalorder %s17, 1
        %s150 = scalar_select %p149, %s17, 1
        %s151 = smul.addr %s150, 30
        %s152 = smul.addr %s148, 60
        %s153 = sadd.s32 %s151, %s152
        %s154 = smul.addr %s153, 4
        %s155 = scalar_lea.vmem %s0, %s154
      $region28: #{_lambda_.1} parent=23 // pred_fallthru
        _
    $region24: #{_lambda_.1} parent=5 // pred_fallthru
      _
    %p156 = scmp.le.s32.totalorder 1, %s9
    %p157 = scmp.lt.s32.totalorder %s9, 5
    %p158 = pnand %p156, %p157
    %p159 = pneg %p158
    // Predicated region
    $region29: #{_lambda_.1} parent=5 // pred_check
      _
    $region30: #{_lambda_.1} parent=5 // pred_check_branch
      %161 = sbr.rel (%p158) target = $region32
    $region31: #{_lambda_.1} parent=5 // pred_region
      %s162 = ssub.s32 %s9, 1
      %p163 = scmp.lt.s32.totalorder %s18, 1
      %s164 = scalar_select %p163, %s18, 1
      %p165 = scmp.lt.s32.totalorder %s19, 1
      %s166 = scalar_select %p165, %s19, 1
      %s167 = smul.addr %s166, 30
      %s168 = smul.addr %s164, 60
      %s169 = sadd.s32 %s167, %s168
      %s170 = smul.addr %s169, 4
      %s171 = scalar_lea.vmem %s0, %s170
      %p172 = pneg %p49
      %p173 = pneg %p46
      %p174 = pneg %p70
      %p175 = pneg %p67
      %p176 = pneg %p91
      %p177 = pneg %p88
      %p178 = pneg %p119
      %p179 = pneg %p116
      %p180 = scmp.lt.s32.totalorder %s18, 1
      %s181 = scalar_select %p180, %s18, 1
      %p182 = scmp.lt.s32.totalorder %s19, 1
      %s183 = scalar_select %p182, %s19, 1
      %s184 = smul.addr %s183, 16
      %s185 = smul.addr %s181, 32
      %s186 = sadd.s32 %s184, %s185
      %s187 = smul.addr %s186, 8
      %s188 = scalar_lea.vmem %s3, %s187
      %p189 = scmp.lt.s32.totalorder %s18, 1
      %s190 = scalar_select %p189, %s18, 1
      %p191 = scmp.lt.s32.totalorder %s19, 1
      %s192 = scalar_select %p191, %s19, 1
      %s193 = smul.addr %s192, 30
      %s194 = smul.addr %s190, 60
      %s195 = sadd.s32 %s193, %s194
      %s196 = smul.addr %s195, 4
      %s197 = scalar_lea.vmem %s0, %s196
      %p198 = scmp.lt.s32.totalorder %s18, 1
      %s199 = scalar_select %p198, %s18, 1
      %p200 = scmp.lt.s32.totalorder %s19, 1
      %s201 = scalar_select %p200, %s19, 1
      %s202 = smul.addr %s201, 16
      %s203 = smul.addr %s199, 32
      %s204 = sadd.s32 %s202, %s203
      %s205 = smul.addr %s204, 8
      %s206 = scalar_lea.vmem %s3, %s205
      %v208 = vld [vmem:[%s197] sm:$0xf]
      %v209 = vld [vmem:[%s197 + $0x4] sm:$0xf]
      %v210 = vld [vmem:[%s197 + $0x8] sm:$0x1]
      %v211 = vld [vmem:[%s197 + $0xc] sm:$0xf]
      %v212 = vld [vmem:[%s197 + $0x10] sm:$0xf]
      %v213 = vld [vmem:[%s197 + $0x14] sm:$0x1]
      %v214 = vld [vmem:[%s197 + $0x18] sm:$0xf]
      %v215 = vld [vmem:[%s197 + $0x1c] sm:$0xf]
      %v216 = vld [vmem:[%s197 + $0x20] sm:$0x1]
      %v217 = vld [vmem:[%s197 + $0x24] sm:$0xf]
      %v218 = vld [vmem:[%s197 + $0x28] sm:$0xf]
      %v219 = vld [vmem:[%s197 + $0x2c] sm:$0x1]
      %v220 = vld [vmem:[%s197 + $0x30] sm:$0xf]
      %v221 = vld [vmem:[%s197 + $0x34] sm:$0xf]
      %v222 = vld [vmem:[%s197 + $0x38] sm:$0x1]
      %v223 = vld [vmem:[%s197 + $0x3c] sm:$0xf]
      %v224 = vld [vmem:[%s197 + $0x40] sm:$0xf]
      %v225 = vld [vmem:[%s197 + $0x44] sm:$0x1]
      %v226 = vld [vmem:[%s197 + $0x48] sm:$0xf]
      %v227 = vld [vmem:[%s197 + $0x4c] sm:$0xf]
      %v228 = vld [vmem:[%s197 + $0x50] sm:$0x1]
      %v229 = vld [vmem:[%s197 + $0x54] sm:$0xf]
      %v230 = vld [vmem:[%s197 + $0x58] sm:$0xf]
      %v231 = vld [vmem:[%s197 + $0x5c] sm:$0x1]
      %v232 = vld [vmem:[%s197 + $0x60] sm:$0xf]
      %v233 = vld [vmem:[%s197 + $0x64] sm:$0xf]
      %v234 = vld [vmem:[%s197 + $0x68] sm:$0x1]
      %v235 = vld [vmem:[%s197 + $0x6c] sm:$0xf]
      %v236 = vld [vmem:[%s197 + $0x70] sm:$0xf]
      %v237 = vld [vmem:[%s197 + $0x74] sm:$0x1]
      %v258 = vunpack.c.l.b16 %v208
      %v259 = vunpack.c.l.b16 %v209
      %v260 = vunpack.c.l.b16 %v211
      %v261 = vunpack.c.l.b16 %v212
      %v262 = vunpack.c.l.b16 %v214
      %v263 = vunpack.c.l.b16 %v215
      %v264 = vunpack.c.l.b16 %v217
      %v265 = vunpack.c.l.b16 %v218
      %v266 = vunpack.c.l.b16 %v220
      %v267 = vunpack.c.l.b16 %v221
      %v268 = vunpack.c.l.b16 %v223
      %v269 = vunpack.c.l.b16 %v224
      %v270 = vunpack.c.l.b16 %v226
      %v271 = vunpack.c.l.b16 %v227
      %v272 = vunpack.c.l.b16 %v229
      %v273 = vunpack.c.l.b16 %v230
      %v274 = vunpack.c.l.b16 %v232
      %v275 = vunpack.c.l.b16 %v233
      %v276 = vunpack.c.l.b16 %v235
      %v277 = vunpack.c.l.b16 %v236
      %v278 = vpack.c.b16 %v259, %v258
      %v279 = vpack.c.b16 %v261, %v260
      %v280 = vpack.c.b16 %v263, %v262
      %v281 = vpack.c.b16 %v265, %v264
      %v282 = vpack.c.b16 %v267, %v266
      %v283 = vpack.c.b16 %v269, %v268
      %v284 = vpack.c.b16 %v271, %v270
      %v285 = vpack.c.b16 %v273, %v272
      %v286 = vpack.c.b16 %v275, %v274
      %v287 = vpack.c.b16 %v277, %v276
      %v298 = vunpack.c.l.b16 %v210
      %v299 = vunpack.c.l.b16 %v213
      %v300 = vunpack.c.l.b16 %v216
      %v301 = vunpack.c.l.b16 %v219
      %v302 = vunpack.c.l.b16 %v222
      %v303 = vunpack.c.l.b16 %v225
      %v304 = vunpack.c.l.b16 %v228
      %v305 = vunpack.c.l.b16 %v231
      %v306 = vunpack.c.l.b16 %v234
      %v307 = vunpack.c.l.b16 %v237
      %v308 = vpack.c.b16 %v298, %v298
      %v309 = vpack.c.b16 %v299, %v299
      %v310 = vpack.c.b16 %v300, %v300
      %v311 = vpack.c.b16 %v301, %v301
      %v312 = vpack.c.b16 %v302, %v302
      %v313 = vpack.c.b16 %v303, %v303
      %v314 = vpack.c.b16 %v304, %v304
      %v315 = vpack.c.b16 %v305, %v305
      %v316 = vpack.c.b16 %v306, %v306
      %v317 = vpack.c.b16 %v307, %v307
      %vm318 = vsmask.f32 7424
      %v320 = vshrl.u32 %v278, 16
      %v322 = vshll.u32 %v278, 16
      %v324 = vrot.slane %v322, 1
      %v325 = vor.u32 %v320, %v324
      %v327 = vshll.u32 %v308, 16
      %v329 = vrot.slane %v327, 1
      %v330 = vsel %vm318, %v325, %v329
      %v332 = vshrl.u32 %v279, 16
      %v334 = vshll.u32 %v279, 16
      %v336 = vrot.slane %v334, 1
      %v337 = vor.u32 %v332, %v336
      %v339 = vshll.u32 %v309, 16
      %v341 = vrot.slane %v339, 1
      %v342 = vsel %vm318, %v337, %v341
      %v344 = vshrl.u32 %v280, 16
      %v346 = vshll.u32 %v280, 16
      %v348 = vrot.slane %v346, 1
      %v349 = vor.u32 %v344, %v348
      %v351 = vshll.u32 %v310, 16
      %v353 = vrot.slane %v351, 1
      %v354 = vsel %vm318, %v349, %v353
      %v356 = vshrl.u32 %v281, 16
      %v358 = vshll.u32 %v281, 16
      %v360 = vrot.slane %v358, 1
      %v361 = vor.u32 %v356, %v360
      %v363 = vshll.u32 %v311, 16
      %v365 = vrot.slane %v363, 1
      %v366 = vsel %vm318, %v361, %v365
      %v368 = vshrl.u32 %v282, 16
      %v370 = vshll.u32 %v282, 16
      %v372 = vrot.slane %v370, 1
      %v373 = vor.u32 %v368, %v372
      %v375 = vshll.u32 %v312, 16
      %v377 = vrot.slane %v375, 1
      %v378 = vsel %vm318, %v373, %v377
      %v380 = vshrl.u32 %v283, 16
      %v382 = vshll.u32 %v283, 16
      %v384 = vrot.slane %v382, 1
      %v385 = vor.u32 %v380, %v384
      %v387 = vshll.u32 %v313, 16
      %v389 = vrot.slane %v387, 1
      %v390 = vsel %vm318, %v385, %v389
      %v392 = vshrl.u32 %v284, 16
      %v394 = vshll.u32 %v284, 16
      %v396 = vrot.slane %v394, 1
      %v397 = vor.u32 %v392, %v396
      %v399 = vshll.u32 %v314, 16
      %v401 = vrot.slane %v399, 1
      %v402 = vsel %vm318, %v397, %v401
      %v404 = vshrl.u32 %v285, 16
      %v406 = vshll.u32 %v285, 16
      %v408 = vrot.slane %v406, 1
      %v409 = vor.u32 %v404, %v408
      %v411 = vshll.u32 %v315, 16
      %v413 = vrot.slane %v411, 1
      %v414 = vsel %vm318, %v409, %v413
      %v416 = vshrl.u32 %v286, 16
      %v418 = vshll.u32 %v286, 16
      %v420 = vrot.slane %v418, 1
      %v421 = vor.u32 %v416, %v420
      %v423 = vshll.u32 %v316, 16
      %v425 = vrot.slane %v423, 1
      %v426 = vsel %vm318, %v421, %v425
      %v428 = vshrl.u32 %v287, 16
      %v430 = vshll.u32 %v287, 16
      %v432 = vrot.slane %v430, 1
      %v433 = vor.u32 %v428, %v432
      %v435 = vshll.u32 %v317, 16
      %v437 = vrot.slane %v435, 1
      %v438 = vsel %vm318, %v433, %v437
      %439 = vrot.lane.b32.xlu0 %v330, 4
      %v440 = vpop.permute.xlu0 %439
      %441 = vrot.lane.b32.xlu0 %v342, 4
      %v442 = vpop.permute.xlu0 %441
      %443 = vrot.lane.b32.xlu0 %v354, 4
      %v444 = vpop.permute.xlu0 %443
      %445 = vrot.lane.b32.xlu0 %v366, 4
      %v446 = vpop.permute.xlu0 %445
      %447 = vrot.lane.b32.xlu0 %v378, 4
      %v448 = vpop.permute.xlu0 %447
      %449 = vrot.lane.b32.xlu0 %v390, 4
      %v450 = vpop.permute.xlu0 %449
      %451 = vrot.lane.b32.xlu0 %v402, 4
      %v452 = vpop.permute.xlu0 %451
      %453 = vrot.lane.b32.xlu0 %v414, 4
      %v454 = vpop.permute.xlu0 %453
      %455 = vrot.lane.b32.xlu0 %v426, 4
      %v456 = vpop.permute.xlu0 %455
      %457 = vrot.lane.b32.xlu0 %v438, 4
      %v458 = vpop.permute.xlu0 %457
      %vm459 = vcmask 1046528
      %v460 = vrot.slane %v278, 1
      %v461 = vrot.slane %v308, 1
      %v462 = vsel %vm459, %v460, %v461
      %v463 = vrot.slane %v279, 1
      %v464 = vrot.slane %v309, 1
      %v465 = vsel %vm459, %v463, %v464
      %v466 = vrot.slane %v280, 1
      %v467 = vrot.slane %v310, 1
      %v468 = vsel %vm459, %v466, %v467
      %v469 = vrot.slane %v281, 1
      %v470 = vrot.slane %v311, 1
      %v471 = vsel %vm459, %v469, %v470
      %v472 = vrot.slane %v282, 1
      %v473 = vrot.slane %v312, 1
      %v474 = vsel %vm459, %v472, %v473
      %v475 = vrot.slane %v283, 1
      %v476 = vrot.slane %v313, 1
      %v477 = vsel %vm459, %v475, %v476
      %v478 = vrot.slane %v284, 1
      %v479 = vrot.slane %v314, 1
      %v480 = vsel %vm459, %v478, %v479
      %v481 = vrot.slane %v285, 1
      %v482 = vrot.slane %v315, 1
      %v483 = vsel %vm459, %v481, %v482
      %v484 = vrot.slane %v286, 1
      %v485 = vrot.slane %v316, 1
      %v486 = vsel %vm459, %v484, %v485
      %v487 = vrot.slane %v287, 1
      %v488 = vrot.slane %v317, 1
      %v489 = vsel %vm459, %v487, %v488
      %490 = vrot.lane.b32.xlu0 %v462, 8
      %v491 = vpop.permute.xlu0 %490
      %492 = vrot.lane.b32.xlu0 %v465, 8
      %v493 = vpop.permute.xlu0 %492
      %494 = vrot.lane.b32.xlu0 %v468, 8
      %v495 = vpop.permute.xlu0 %494
      %496 = vrot.lane.b32.xlu0 %v471, 8
      %v497 = vpop.permute.xlu0 %496
      %498 = vrot.lane.b32.xlu0 %v474, 8
      %v499 = vpop.permute.xlu0 %498
      %500 = vrot.lane.b32.xlu0 %v477, 8
      %v501 = vpop.permute.xlu0 %500
      %502 = vrot.lane.b32.xlu0 %v480, 8
      %v503 = vpop.permute.xlu0 %502
      %504 = vrot.lane.b32.xlu0 %v483, 8
      %v505 = vpop.permute.xlu0 %504
      %506 = vrot.lane.b32.xlu0 %v486, 8
      %v507 = vpop.permute.xlu0 %506
      %508 = vrot.lane.b32.xlu0 %v489, 8
      %v509 = vpop.permute.xlu0 %508
      %vm510 = vcmask 31744
      %v512 = vsel %vm510, %v278, %v440
      %v514 = vsel %vm510, %v279, %v442
      %v516 = vsel %vm510, %v280, %v444
      %v518 = vsel %vm510, %v281, %v446
      %v520 = vsel %vm510, %v282, %v448
      %v522 = vsel %vm510, %v283, %v450
      %v524 = vsel %vm510, %v284, %v452
      %v526 = vsel %vm510, %v285, %v454
      %v528 = vsel %vm510, %v286, %v456
      %v530 = vsel %vm510, %v287, %v458
      %vm531 = vcmask 64512
      %v533 = vsel %vm531, %v512, %v491
      %v535 = vsel %vm531, %v514, %v493
      %v537 = vsel %vm531, %v516, %v495
      %v539 = vsel %vm531, %v518, %v497
      %v541 = vsel %vm531, %v520, %v499
      %v543 = vsel %vm531, %v522, %v501
      %v545 = vsel %vm531, %v524, %v503
      %v547 = vsel %vm531, %v526, %v505
      %v549 = vsel %vm531, %v528, %v507
      %v551 = vsel %vm531, %v530, %v509
      %v552 = vld [vmem:[%s2] sm:$0x1]
      %v554 = vlaneseq
      %v555 = vshrl.u32 %v554, 7
      %v556 = vsub.s32 0, %v555
      %v557 = vrot.slane %v552, %v556
      %567 = vrot.lane.b32.xlu0 %v535, 12
      %v568 = vpop.permute.xlu0 %567
      %569 = vrot.lane.b32.xlu0 %v537, 12
      %v570 = vpop.permute.xlu0 %569
      %571 = vrot.lane.b32.xlu0 %v539, 12
      %v572 = vpop.permute.xlu0 %571
      %573 = vrot.lane.b32.xlu0 %v541, 12
      %v574 = vpop.permute.xlu0 %573
      %575 = vrot.lane.b32.xlu0 %v543, 12
      %v576 = vpop.permute.xlu0 %575
      %577 = vrot.lane.b32.xlu0 %v545, 12
      %v578 = vpop.permute.xlu0 %577
      %579 = vrot.lane.b32.xlu0 %v547, 12
      %v580 = vpop.permute.xlu0 %579
      %581 = vrot.lane.b32.xlu0 %v549, 12
      %v582 = vpop.permute.xlu0 %581
      %584 = vrot.lane.b32.xlu0 %v537, 24
      %v585 = vpop.permute.xlu0 %584
      %586 = vrot.lane.b32.xlu0 %v539, 24
      %v587 = vpop.permute.xlu0 %586
      %588 = vrot.lane.b32.xlu0 %v541, 24
      %v589 = vpop.permute.xlu0 %588
      %590 = vrot.lane.b32.xlu0 %v543, 24
      %v591 = vpop.permute.xlu0 %590
      %592 = vrot.lane.b32.xlu0 %v545, 24
      %v593 = vpop.permute.xlu0 %592
      %594 = vrot.lane.b32.xlu0 %v547, 24
      %v595 = vpop.permute.xlu0 %594
      %596 = vrot.lane.b32.xlu0 %v549, 24
      %v597 = vpop.permute.xlu0 %596
      %598 = vrot.lane.b32.xlu0 %v551, 24
      %v599 = vpop.permute.xlu0 %598
      %vm600 = vcmask 97280
      %v602 = vsel %vm600, %v533, %v568
      %v604 = vsel %vm600, %v535, %v570
      %v606 = vsel %vm600, %v537, %v572
      %v608 = vsel %vm600, %v539, %v574
      %v610 = vsel %vm600, %v541, %v576
      %v612 = vsel %vm600, %v543, %v578
      %v614 = vsel %vm600, %v545, %v580
      %v616 = vsel %vm600, %v547, %v582
      %vm617 = vcmask 195584
      %v619 = vsel %vm617, %v602, %v585
      %v621 = vsel %vm617, %v604, %v587
      %v623 = vsel %vm617, %v606, %v589
      %v625 = vsel %vm617, %v608, %v591
      %v627 = vsel %vm617, %v610, %v593
      %v629 = vsel %vm617, %v612, %v595
      %v631 = vsel %vm617, %v614, %v597
      %v633 = vsel %vm617, %v616, %v599
      %v634 = vld [vmem:[%s1] sm:$0xf]
      %v635 = vld [vmem:[%s1 + $0x4] sm:$0x3]
      %v636 = vld [vmem:[%s1 + $0x8] sm:$0xf]
      %v637 = vld [vmem:[%s1 + $0xc] sm:$0x3]
      %v638 = vld [vmem:[%s1 + $0x10] sm:$0xf]
      %v639 = vld [vmem:[%s1 + $0x14] sm:$0x3]
      %v647 = vunpack.c.l.s4 1983009808
      %v648 = vunpack.c.0.s8 %v647
      %v649 = vlaneseq
      %v650 = vshrl.u32 %v649, 7
      %v651 = vsub.s32 %v648, %v650
      %v652 = vrot.slane %v634, %v651
      %v653 = vcombine.high %v652, %v652
      %v655 = vunpack.c.l.s4 1983009808
      %v656 = vunpack.c.0.s8 %v655
      %v657 = vlaneseq
      %v658 = vshrl.u32 %v657, 7
      %v659 = vsub.s32 %v656, %v658
      %v660 = vrot.slane %v635, %v659
      %v662 = vunpack.c.l.s4 1983009808
      %v663 = vunpack.c.0.s8 %v662
      %v664 = vlaneseq
      %v665 = vshrl.u32 %v664, 7
      %v666 = vsub.s32 %v663, %v665
      %v667 = vrot.slane %v636, %v666
      %v668 = vcombine.high %v667, %v667
      %v670 = vunpack.c.l.s4 1983009808
      %v671 = vunpack.c.0.s8 %v670
      %v672 = vlaneseq
      %v673 = vshrl.u32 %v672, 7
      %v674 = vsub.s32 %v671, %v673
      %v675 = vrot.slane %v637, %v674
      %v677 = vunpack.c.l.s4 1983009808
      %v678 = vunpack.c.0.s8 %v677
      %v679 = vlaneseq
      %v680 = vshrl.u32 %v679, 7
      %v681 = vsub.s32 %v678, %v680
      %v682 = vrot.slane %v638, %v681
      %v683 = vcombine.high %v682, %v682
      %v685 = vunpack.c.l.s4 1983009808
      %v686 = vunpack.c.0.s8 %v685
      %v687 = vlaneseq
      %v688 = vshrl.u32 %v687, 7
      %v689 = vsub.s32 %v686, %v688
      %v690 = vrot.slane %v639, %v689
      %v691 = vcombine.low %v652, %v653
      %v692 = vcombine.low %v660, %v667
      %v694 = vunpack.c.l.s4 1983009808
      %v695 = vunpack.c.0.s8 %v694
      %v696 = vlaneseq
      %v697 = vshrl.u32 %v696, 7
      %v698 = vsub.s32 %v695, %v697
      %v699 = vrot.slane %v691, %v698
      %v701 = vunpack.c.l.s4 1983009808
      %v702 = vunpack.c.0.s8 %v701
      %v703 = vlaneseq
      %v704 = vshrl.u32 %v703, 7
      %v705 = vsub.s32 %v702, %v704
      %v706 = vrot.slane %v692, %v705
      %v707 = vcombine.low %v699, %v706
      %v708 = vcombine.low %v668, %v675
      %v709 = vcombine.low %v682, %v683
      %v711 = vunpack.c.l.s4 1983009808
      %v712 = vunpack.c.0.s8 %v711
      %v713 = vlaneseq
      %v714 = vshrl.u32 %v713, 7
      %v715 = vsub.s32 %v712, %v714
      %v716 = vrot.slane %v708, %v715
      %v718 = vunpack.c.l.s4 1983009808
      %v719 = vunpack.c.0.s8 %v718
      %v720 = vlaneseq
      %v721 = vshrl.u32 %v720, 7
      %v722 = vsub.s32 %v719, %v721
      %v723 = vrot.slane %v709, %v722
      %v724 = vcombine.low %v716, %v723
      %v726 = vunpack.c.l.s4 1983009808
      %v727 = vunpack.c.0.s8 %v726
      %v728 = vlaneseq
      %v729 = vshrl.u32 %v728, 7
      %v730 = vsub.s32 %v727, %v729
      %v731 = vrot.slane %v690, %v730
      %vm734 = vcmask 293888
      %v735 = vsel %vm734, %v619, 0
      %v737 = vsel %vm734, %v621, 0
      %v739 = vsel %vm734, %v623, 0
      %v741 = vsel %vm734, %v625, 0
      %v743 = vsel %vm734, %v627, 0
      %v745 = vsel %vm734, %v629, 0
      %v747 = vsel %vm734, %v631, 0
      %v749 = vsel %vm734, %v633, 0
      %vm751 = vcmask 1041408
      %v753 = vsel %vm751, %v731, 0
      %755 = vmatprep.subr.bf16.mxu0 0
      %756 = vmatpush1.bf16.msra.mxu0 0
      %757 = vmatprep.subr.bf16.mxu0 0
      %758 = vmatpush1.bf16.msra.mxu0 0
      %759 = vmatprep.subr.bf16.mxu0 0
      %760 = vmatpush1.bf16.msra.mxu0 0
      %761 = vmatprep.subr.bf16.mxu0 0
      %762 = vmatpush1.bf16.msra.mxu0 0
      %763 = vmatprep.subr.bf16.mxu0 0
      %764 = vmatpush1.bf16.msra.mxu0 0
      %765 = vmatprep.subr.bf16.mxu0 0
      %766 = vmatpush1.bf16.msra.mxu0 %v753
      %767 = vmatprep.subr.bf16.mxu0 0
      %768 = vmatpush1.bf16.msra.mxu0 %v724
      %769 = vmatprep.subr.bf16.mxu0 0
      %770 = vmatpush1.bf16.msra.mxu0 %v707
      %771 = vmatprep.subr.bf16.mxu0 0
      %772 = vmatpush2.bf16.msra.mxu0 0
      %773 = vmatprep.subr.bf16.mxu0 0
      %774 = vmatpush2.bf16.msra.mxu0 0
      %775 = vmatprep.subr.bf16.mxu0 0
      %776 = vmatpush2.bf16.msra.mxu0 0
      %777 = vmatprep.subr.bf16.mxu0 0
      %778 = vmatpush2.bf16.msra.mxu0 0
      %779 = vmatprep.subr.bf16.mxu0 0
      %780 = vmatpush2.bf16.msra.mxu0 0
      %781 = vmatprep.subr.bf16.mxu0 0
      %782 = vmatpush2.bf16.msra.mxu0 0
      %783 = vmatprep.subr.bf16.mxu0 0
      %784 = vmatpush2.bf16.msra.mxu0 0
      %785 = vmatprep.subr.bf16.mxu0 0
      %786 = vmatpush2.bf16.msra.mxu0 0
      %787 = vmatprep.mubr.bf16.mxu0 0
      %788 = vmatmul.mubr.bf16.gmra.mxu0 %v735
      %v789 = vpop.f32.mrf.mxu0
      %v790 = vadd.f32 0.0, %v789
      %v791 = vpop.f32.mrf.mxu0
      %v792 = vpop.f32.mrf.mxu0
      %v793 = vadd.f32 0.0, %v792
      %v794 = vpop.f32.mrf.mxu0
      %795 = vmatprep.mubr.bf16.mxu0 0
      %796 = vmatmul.mubr.bf16.gmra.mxu0 %v737
      %v797 = vpop.f32.mrf.mxu0
      %v798 = vadd.f32 0.0, %v797
      %v799 = vpop.f32.mrf.mxu0
      %v800 = vpop.f32.mrf.mxu0
      %v801 = vadd.f32 0.0, %v800
      %v802 = vpop.f32.mrf.mxu0
      %803 = vmatprep.mubr.bf16.mxu0 0
      %804 = vmatmul.mubr.bf16.gmra.mxu0 %v739
      %v805 = vpop.f32.mrf.mxu0
      %v806 = vadd.f32 0.0, %v805
      %v807 = vpop.f32.mrf.mxu0
      %v808 = vpop.f32.mrf.mxu0
      %v809 = vadd.f32 0.0, %v808
      %v810 = vpop.f32.mrf.mxu0
      %811 = vmatprep.mubr.bf16.mxu0 0
      %812 = vmatmul.mubr.bf16.gmra.mxu0 %v741
      %v813 = vpop.f32.mrf.mxu0
      %v814 = vadd.f32 0.0, %v813
      %v815 = vpop.f32.mrf.mxu0
      %v816 = vpop.f32.mrf.mxu0
      %v817 = vadd.f32 0.0, %v816
      %v818 = vpop.f32.mrf.mxu0
      %819 = vmatprep.mubr.bf16.mxu0 0
      %820 = vmatmul.mubr.bf16.gmra.mxu0 %v743
      %v821 = vpop.f32.mrf.mxu0
      %v822 = vadd.f32 0.0, %v821
      %v823 = vpop.f32.mrf.mxu0
      %v824 = vpop.f32.mrf.mxu0
      %v825 = vadd.f32 0.0, %v824
      %v826 = vpop.f32.mrf.mxu0
      %827 = vmatprep.mubr.bf16.mxu0 0
      %828 = vmatmul.mubr.bf16.gmra.mxu0 %v745
      %v829 = vpop.f32.mrf.mxu0
      %v830 = vadd.f32 0.0, %v829
      %v831 = vpop.f32.mrf.mxu0
      %v832 = vpop.f32.mrf.mxu0
      %v833 = vadd.f32 0.0, %v832
      %v834 = vpop.f32.mrf.mxu0
      %835 = vmatprep.mubr.bf16.mxu0 0
      %836 = vmatmul.mubr.bf16.gmra.mxu0 %v747
      %v837 = vpop.f32.mrf.mxu0
      %v838 = vadd.f32 0.0, %v837
      %v839 = vpop.f32.mrf.mxu0
      %v840 = vpop.f32.mrf.mxu0
      %v841 = vadd.f32 0.0, %v840
      %v842 = vpop.f32.mrf.mxu0
      %843 = vmatprep.mubr.bf16.mxu0 0
      %844 = vmatmul.mubr.bf16.gmra.mxu0 %v749
      %v845 = vpop.f32.mrf.mxu0
      %v846 = vadd.f32 0.0, %v845
      %v847 = vpop.f32.mrf.mxu0
      %v848 = vpop.f32.mrf.mxu0
      %v849 = vadd.f32 0.0, %v848
      %v850 = vpop.f32.mrf.mxu0
      %851 = vdwg.mxu0
      %v852 = vadd.f32 %v557, %v790
      %v853 = vadd.f32 %v557, %v793
      %v854 = vadd.f32 %v557, %v798
      %v855 = vadd.f32 %v557, %v801
      %v856 = vadd.f32 %v557, %v806
      %v857 = vadd.f32 %v557, %v809
      %v858 = vadd.f32 %v557, %v814
      %v859 = vadd.f32 %v557, %v817
      %v860 = vadd.f32 %v557, %v822
      %v861 = vadd.f32 %v557, %v825
      %v862 = vadd.f32 %v557, %v830
      %v863 = vadd.f32 %v557, %v833
      %v864 = vadd.f32 %v557, %v838
      %v865 = vadd.f32 %v557, %v841
      %v866 = vadd.f32 %v557, %v846
      %v867 = vadd.f32 %v557, %v849
      %868 = vst.msk [vmem:[%s206] sm:$0xff] %vm531, %v852
      %869 = vst.msk [vmem:[%s206 + $0x8] sm:$0xff] %vm531, %v853
      %870 = vst.msk [vmem:[%s206 + $0x10] sm:$0xff] %vm531, %v854
      %871 = vst.msk [vmem:[%s206 + $0x18] sm:$0xff] %vm531, %v855
      %872 = vst.msk [vmem:[%s206 + $0x20] sm:$0xff] %vm531, %v856
      %873 = vst.msk [vmem:[%s206 + $0x28] sm:$0xff] %vm531, %v857
      %874 = vst.msk [vmem:[%s206 + $0x30] sm:$0xff] %vm531, %v858
      %875 = vst.msk [vmem:[%s206 + $0x38] sm:$0xff] %vm531, %v859
      %876 = vst.msk [vmem:[%s206 + $0x40] sm:$0xff] %vm531, %v860
      %877 = vst.msk [vmem:[%s206 + $0x48] sm:$0xff] %vm531, %v861
      %878 = vst.msk [vmem:[%s206 + $0x50] sm:$0xff] %vm531, %v862
      %879 = vst.msk [vmem:[%s206 + $0x58] sm:$0xff] %vm531, %v863
      %880 = vst.msk [vmem:[%s206 + $0x60] sm:$0xff] %vm531, %v864
      %881 = vst.msk [vmem:[%s206 + $0x68] sm:$0xff] %vm531, %v865
      %882 = vst.msk [vmem:[%s206 + $0x70] sm:$0xff] %vm531, %v866
      %883 = vst.msk [vmem:[%s206 + $0x78] sm:$0xff] %vm531, %v867
      %p884 = scmp.lt.s32.totalorder %s18, 1
      %s885 = scalar_select %p884, %s18, 1
      %p886 = scmp.lt.s32.totalorder %s19, 1
      %s887 = scalar_select %p886, %s19, 1
      %s888 = smul.addr %s887, 16
      %s889 = smul.addr %s885, 32
      %s890 = sadd.s32 %s888, %s889
      %s891 = smul.addr %s890, 8
      %s892 = scalar_lea.vmem %s3, %s891
      // Predicated region
      $region33: #{_lambda_.1} parent=31 // pred_check
        %p893 = pneg %p116
      $region34: #{_lambda_.1} parent=31 // pred_check_branch
        %895 = sbr.rel (%p893) target = $region36
      $region35: #{_lambda_.1} parent=31 // pred_region
        _
      $region36: #{_lambda_.1} parent=31 // pred_fallthru
        _
    $region32: #{_lambda_.1} parent=5 // pred_fallthru
      _
    %p896 = scmp.le.s32.totalorder 2, %s9
    // Predicated region
    $region37: #{_lambda_.1} parent=5 // pred_check
      %p897 = pneg %p896
    $region38: #{_lambda_.1} parent=5 // pred_check_branch
      %899 = sbr.rel (%p897) target = $region40
    $region39: #{_lambda_.1} parent=5 // pred_region
      %s900 = ssub.s32 %s9, 2
      // Predicated region
      $region41: #{_lambda_.1} parent=39 // pred_check
        %p901 = pneg %p122
      $region42: #{_lambda_.1} parent=39 // pred_check_branch
        %903 = sbr.rel (%p901) target = $region44
      $region43: #{_lambda_.1} parent=39 // pred_region
        %p904 = scmp.lt.s32.totalorder %s20, 1
        %s905 = scalar_select %p904, %s20, 1
        %p906 = scmp.lt.s32.totalorder %s21, 1
        %s907 = scalar_select %p906, %s21, 1
        %s908 = smul.addr %s907, 16
        %s909 = smul.addr %s905, 32
        %s910 = sadd.s32 %s908, %s909
        %s911 = smul.addr %s910, 8
        %s912 = scalar_lea.vmem %s3, %s911
      $region44: #{_lambda_.1} parent=39 // pred_fallthru
        _
    $region40: #{_lambda_.1} parent=5 // pred_fallthru
      _
  $region6: #{_lambda_.1} parent=0 // loop_footer
    %s13 = sadd.s32 1, %s9
  $region7: #{_lambda_.1} parent=0 // loop_footer_branch
    %8 = sbr.rel target = $region3
  $region8: #{_lambda_.1} parent=0 // loop_exit
    _

</llo_original>
